<compile_context>
chip_gen: v7x
topology: tpu7x:2x2x1
jax: 0.10.0
libtpu: 0.0.40
codegen_flags: <defaults>
</compile_context>

<pallas_src>
import jax
import jax.numpy as jnp
from jax import lax
from jax.experimental import pallas as pl
from jax.experimental.pallas import tpu as pltpu


# ----------------------------------------------------------------------------
# tunables / helpers
# ----------------------------------------------------------------------------
_FUSE_LIMIT_F32_BYTES = 2 << 20     # fuse pool+apply when C*HW*4 bytes <= this
_STREAM_BLOCK_BUDGET = 2 << 20      # target bytes per streamed (C, tile) block
_VMEM_FLOOR = 8 << 20
_VMEM_CAP = 32 << 20                # safe on v5e/v6e (128 MiB) and v7x (64 MiB)


def _round_up(a, b):
    return (a + b - 1) // b * b


def _vmem_limit(need_bytes):
    return int(min(max(need_bytes, _VMEM_FLOOR), _VMEM_CAP))


def _plan_stream_tiles(hw, c, itemsize, budget=_STREAM_BLOCK_BUDGET):
    """Pick a lane tile (multiple of 128) for the streaming fallback.

    Prefers a tile that divides round_up(hw, 128) exactly, so images whose HW
    is already a multiple of 128 (the common big-image case) stream with zero
    padding and no partial blocks.  Falls back to padding up to a tile
    multiple only when the best exact divisor would make tiles too small to
    amortize the ~0.35 us per-grid-step overhead.
    Returns (tile, hw_padded).
    """
    k_max = max(1, budget // max(1, c * itemsize * 128))
    hw128 = _round_up(hw, 128)
    q = hw128 // 128
    if q <= k_max:
        return hw128, hw128                       # single tile, minimal pad
    divisors = [d for d in range(1, k_max + 1) if q % d == 0]
    k = max(divisors)
    if k >= min(16, k_max):                       # tile >= 2048 lanes is fine
        return 128 * k, hw128
    return 128 * k_max, _round_up(hw, 128 * k_max)


# ----------------------------------------------------------------------------
# CALayer: Pallas kernels
# ----------------------------------------------------------------------------
def _make_fused_ca_kernel(inv_hw, with_skip):
    """pool -> MLP -> rescale (+residual) on a resident (C, HW) block."""

    def _attention(x_f32, w1_ref, w2_ref, b1_ref, b2_ref):
        mean = jnp.sum(x_f32, axis=1, keepdims=True) * inv_hw          # (C, 1)
        mid = jnp.dot(w1_ref[...], mean,
                      preferred_element_type=jnp.float32) + b1_ref[...]
        mid = jnp.maximum(mid, 0.0)                                    # (Cr,1)
        att = jnp.dot(w2_ref[...], mid,
                      preferred_element_type=jnp.float32) + b2_ref[...]
        return jax.nn.sigmoid(att)                                     # (C, 1)

    if with_skip:
        def kernel(x_ref, w1_ref, w2_ref, b1_ref, b2_ref, s_ref, o_ref):
            x = x_ref[0].astype(jnp.float32)                           # (C,HW)
            att = _attention(x, w1_ref, w2_ref, b1_ref, b2_ref)
            o_ref[0] = (x * att + s_ref[0].astype(jnp.float32)).astype(o_ref.dtype)
    else:
        def kernel(x_ref, w1_ref, w2_ref, b1_ref, b2_ref, o_ref):
            x = x_ref[0].astype(jnp.float32)
            att = _attention(x, w1_ref, w2_ref, b1_ref, b2_ref)
            o_ref[0] = (x * att).astype(o_ref.dtype)

    return kernel


def ca_layer(x, w1, w2, b1=None, b2=None, skip=None, *, tile_hw=None,
             force_streaming=False):
    """Channel attention:  out = x * sigmoid(W2 @ relu(W1 @ mean(x) + b1) + b2)
    Optionally fuses the CAB residual add:  out = skip + x * att.

    x:    (N, C, H, W)   any float dtype (f32 / bf16)
    w1:   (C//r, C)      1x1 conv weight (squeezed)
    w2:   (C, C//r)
    b1:   (C//r,) or None
    b2:   (C,)    or None
    skip: (N, C, H, W) or None
    """
    N, C, H, W = x.shape
    HW = H * W
    Cr = w1.shape[0]
    itemsize = jnp.dtype(x.dtype).itemsize

    x_flat = x.reshape(N, C, HW)
    skip_flat = skip.reshape(N, C, HW) if skip is not None else None
    with_skip = skip_flat is not None

    if b1 is None:
        b1 = jnp.zeros((Cr,), jnp.float32)
    if b2 is None:
        b2 = jnp.zeros((C,), jnp.float32)
    b1c = b1.reshape(Cr, 1).astype(jnp.float32)
    b2c = b2.reshape(C, 1).astype(jnp.float32)
    w1f = w1.astype(jnp.float32)
    w2f = w2.astype(jnp.float32)
    inv_hw = 1.0 / float(HW)

    use_fused = (not force_streaming) and (tile_hw is None) and \
        (C * HW * 4 <= _FUSE_LIMIT_F32_BYTES)

    # ------------------------------------------------------------------ fused
    if use_fused:
        kernel = _make_fused_ca_kernel(inv_hw, with_skip)
        n_streams = 3 if with_skip else 2
        block_bytes = C * HW * itemsize
        f32_block = C * HW * 4
        vmem = _vmem_limit(2 * n_streams * block_bytes + 3 * f32_block + (2 << 20))

        data_spec = pl.BlockSpec((1, C, HW), lambda n: (n, 0, 0))
        in_specs = [data_spec,
                    pl.BlockSpec((Cr, C), lambda n: (0, 0)),
                    pl.BlockSpec((C, Cr), lambda n: (0, 0)),
                    pl.BlockSpec((Cr, 1), lambda n: (0, 0)),
                    pl.BlockSpec((C, 1), lambda n: (0, 0))]
        operands = [x_flat, w1f, w2f, b1c, b2c]
        if with_skip:
            in_specs.append(data_spec)
            operands.append(skip_flat)

        out_flat = pl.pallas_call(
            kernel,
            out_shape=jax.ShapeDtypeStruct((N, C, HW), x.dtype),
            grid_spec=pltpu.PrefetchScalarGridSpec(
                num_scalar_prefetch=0,
                grid=(N,),
                in_specs=in_specs,
                out_specs=pl.BlockSpec((1, C, HW), lambda n: (n, 0, 0)),
            ),
            compiler_params=pltpu.CompilerParams(
                dimension_semantics=("parallel",),
                vmem_limit_bytes=vmem),
        )(*operands)
        return out_flat.reshape(N, C, H, W)

    # ------------------------------------------------------ streaming fallback
    if tile_hw is not None:
        tile = max(128, (int(tile_hw) // 128) * 128)
        hw_pad = _round_up(HW, tile)
    else:
        tile, hw_pad = _plan_stream_tiles(HW, C, itemsize)
    num_tiles = hw_pad // tile

    if hw_pad != HW:
        # TODO(synk): replace these pads / the output slice with in-kernel tail
        # masking + partial edge blocks to drop the extra HBM copies on
        # non-128-aligned spatial sizes (fallback path only).
        x_flat = jnp.pad(x_flat, ((0, 0), (0, 0), (0, hw_pad - HW)))
        if with_skip:
            skip_flat = jnp.pad(skip_flat, ((0, 0), (0, 0), (0, hw_pad - HW)))

    # pass 1: streaming pooling reduction (accumulator + pl.when init/finalize)
    def pool_kernel(x_ref, sum_ref, acc_ref):
        t = pl.program_id(1)

        @pl.when(t == 0)
        def _init():
            acc_ref[...] = jnp.zeros_like(acc_ref)

        xt = x_ref[0].astype(jnp.float32)                       # (C, tile)
        acc_ref[...] += jnp.sum(xt, axis=1, keepdims=True)      # (C, 1)

        @pl.when(t == pl.num_programs(1) - 1)
        def _finalize():
            sum_ref[0] = acc_ref[...]

    sums = pl.pallas_call(
        pool_kernel,
        out_shape=jax.ShapeDtypeStruct((N, C, 1), jnp.float32),
        grid_spec=pltpu.PrefetchScalarGridSpec(
            num_scalar_prefetch=0,
            grid=(N, num_tiles),
            in_specs=[pl.BlockSpec((1, C, tile), lambda n, t: (n, 0, t))],
            out_specs=pl.BlockSpec((1, C, 1), lambda n, t: (n, 0, 0)),
            scratch_shapes=[pltpu.VMEM((C, 1), jnp.float32)],
        ),
        compiler_params=pltpu.CompilerParams(
            dimension_semantics=("parallel", "arbitrary"),
            vmem_limit_bytes=_vmem_limit(
                2 * C * tile * itemsize + C * tile * 4 + (2 << 20))),
    )(x_flat)

    # Tiny attention MLP in plain JAX on the pooled means: (Cr,C)x(C,1) would
    # be <1% MXU utilization, so keep it off the streaming kernel entirely.
    mean = sums * inv_hw                                               # (N,C,1)
    mid = jnp.maximum(jnp.einsum('rc,nco->nro', w1f, mean) + b1c[None], 0.0)
    att = jax.nn.sigmoid(jnp.einsum('cr,nro->nco', w2f, mid) + b2c[None])

    # pass 2: lane-dense streaming apply (+ fused residual add)
    if with_skip:
        def apply_kernel(att_ref, x_ref, s_ref, o_ref):
            y = x_ref[0].astype(jnp.float32) * att_ref[0]
            o_ref[0] = (y + s_ref[0].astype(jnp.float32)).astype(o_ref.dtype)

        operands = (att, x_flat, skip_flat)
        in_specs = [
            pl.BlockSpec((1, C, 1), lambda n, t: (n, 0, 0)),
            pl.BlockSpec((1, C, tile), lambda n, t: (n, 0, t)),
            pl.BlockSpec((1, C, tile), lambda n, t: (n, 0, t)),
        ]
        n_streams = 3
    else:
        def apply_kernel(att_ref, x_ref, o_ref):
            o_ref[0] = (x_ref[0].astype(jnp.float32) * att_ref[0]).astype(o_ref.dtype)

        operands = (att, x_flat)
        in_specs = [
            pl.BlockSpec((1, C, 1), lambda n, t: (n, 0, 0)),
            pl.BlockSpec((1, C, tile), lambda n, t: (n, 0, t)),
        ]
        n_streams = 2

    out_flat = pl.pallas_call(
        apply_kernel,
        out_shape=jax.ShapeDtypeStruct((N, C, hw_pad), x.dtype),
        grid_spec=pltpu.PrefetchScalarGridSpec(
            num_scalar_prefetch=0,
            grid=(N, num_tiles),
            in_specs=in_specs,
            out_specs=pl.BlockSpec((1, C, tile), lambda n, t: (n, 0, t)),
        ),
        compiler_params=pltpu.CompilerParams(
            dimension_semantics=("parallel", "parallel"),
            vmem_limit_bytes=_vmem_limit(
                2 * n_streams * C * tile * itemsize + 2 * C * tile * 4 + (2 << 20))),
    )(*operands)

    if hw_pad != HW:
        out_flat = out_flat[:, :, :HW]
    return out_flat.reshape(N, C, H, W)


# ----------------------------------------------------------------------------
# Rest of DownBlock (non-Pallas glue)
# ----------------------------------------------------------------------------
def conv2d_nchw(x, w, b=None, stride=1, padding=1):
    # TODO(synk): 3x3 spatial convs use lax.conv_general_dilated; a halo-tiled
    # Pallas conv kernel is not implemented here.
    out = lax.conv_general_dilated(
        x, w,
        window_strides=(stride, stride),
        padding=((padding, padding), (padding, padding)),
        dimension_numbers=('NCHW', 'OIHW', 'NCHW'))
    if b is not None:
        out = out + b.reshape(1, -1, 1, 1)
    return out


def prelu(x, a):
    return jnp.where(x >= 0, x, a * x)


def cab_forward(x, p):
    r = conv2d_nchw(x, p['body_w1'])          # conv(n_feat, n_feat, 3, bias=False)
    r = prelu(r, p['act_a'])                  # act
    r = conv2d_nchw(r, p['body_w2'])          # conv(n_feat, n_feat, 3, bias=False)
    # CALayer with CAB's residual add fused into the Pallas kernel.
    return ca_layer(r, p['ca_w1'], p['ca_w2'], skip=x)


def down_block_forward(x, params):
    enc = x
    for p in params['cabs']:
        enc = cab_forward(enc, p)
    down = conv2d_nchw(enc, params['down_w'], b=params['down_b'], stride=2, padding=1)
    return down, enc


# ----------------------------------------------------------------------------
# Pure-JAX references
# ----------------------------------------------------------------------------
def ca_layer_ref(x, w1, w2, b1=None, b2=None, skip=None):
    y = jnp.mean(x, axis=(2, 3), keepdims=True)
    y = jnp.einsum('rc,ncij->nrij', w1, y)
    if b1 is not None:
        y = y + b1.reshape(1, -1, 1, 1)
    y = jnp.maximum(y, 0.0)
    y = jnp.einsum('cr,nrij->ncij', w2, y)
    if b2 is not None:
        y = y + b2.reshape(1, -1, 1, 1)
    y = jax.nn.sigmoid(y)
    out = x * y
    if skip is not None:
        out = out + skip
    return out


def cab_forward_ref(x, p):
    r = conv2d_nchw(x, p['body_w1'])
    r = prelu(r, p['act_a'])
    r = conv2d_nchw(r, p['body_w2'])
    return ca_layer_ref(r, p['ca_w1'], p['ca_w2'], skip=x)


def down_block_ref(x, params):
    enc = x
    for p in params['cabs']:
        enc = cab_forward_ref(enc, p)
    down = conv2d_nchw(enc, params['down_w'], b=params['down_b'], stride=2, padding=1)
    return down, enc


# ----------------------------------------------------------------------------
# demo / self-check
# ----------------------------------------------------------------------------
def init_downblock_params(key, cin, cout, n_cab, reduction, ksize=3, scale=0.05):
    cr = max(1, cin // reduction)
    cabs = []
    for _ in range(n_cab):
        key, k1, k2, k3, k4 = jax.random.split(key, 5)
        cabs.append(dict(
            body_w1=jax.random.normal(k1, (cin, cin, ksize, ksize), jnp.float32) * scale,
            body_w2=jax.random.normal(k2, (cin, cin, ksize, ksize), jnp.float32) * scale,
            act_a=jnp.float32(0.25),
            ca_w1=jax.random.normal(k3, (cr, cin), jnp.float32) * scale,
            ca_w2=jax.random.normal(k4, (cin, cr), jnp.float32) * scale,
        ))
    key, kd, kb = jax.random.split(key, 3)
    return dict(
        cabs=cabs,
        down_w=jax.random.normal(kd, (cout, cin, 3, 3), jnp.float32) * scale,
        down_b=jax.random.normal(kb, (cout,), jnp.float32) * scale,
    )


if __name__ == "__main__":
    # Small shapes consistent with the module: channel=32, reduction=16 -> Cr=2.
    N, Cin, Cout, H, W = 2, 32, 48, 16, 16
    n_cab, reduction = 2, 16

    key = jax.random.PRNGKey(0)
    key, kx, kxs, ksk = jax.random.split(key, 4)
    params = init_downblock_params(key, Cin, Cout, n_cab, reduction)
    ca_w1 = params['cabs'][0]['ca_w1']
    ca_w2 = params['cabs'][0]['ca_w2']

    # 1) Fused single-pass CALayer on an awkward spatial size (20x20 -> HW=400):
    #    whole-image block, no padding or output slicing.
    xs = jax.random.normal(kxs, (N, Cin, 20, 20), dtype=jnp.float32)
    ca_out = jax.block_until_ready(ca_layer(xs, ca_w1, ca_w2))
    ca_exp = ca_layer_ref(xs, ca_w1, ca_w2)
    assert ca_out.shape == xs.shape
    assert jnp.allclose(ca_out, ca_exp, atol=1e-5, rtol=1e-5), "fused CALayer mismatch"

    # 2) Streaming fallback (forced): multi-tile pooling reduction + lane-dense
    #    apply with fused residual, forced 128-lane tile on HW=400.
    sk = jax.random.normal(ksk, xs.shape, dtype=jnp.float32)
    ca_out_s = jax.block_until_ready(
        ca_layer(xs, ca_w1, ca_w2, skip=sk, tile_hw=128, force_streaming=True))
    ca_exp_s = ca_layer_ref(xs, ca_w1, ca_w2, skip=sk)
    assert jnp.allclose(ca_out_s, ca_exp_s, atol=1e-5, rtol=1e-5), "streaming CALayer mismatch"

    # 3) bf16 streaming-dtype smoke test (pool/attention math stays f32).
    xs_bf = xs.astype(jnp.bfloat16)
    ca_out_bf = jax.block_until_ready(ca_layer(xs_bf, ca_w1, ca_w2))
    ca_exp_bf = ca_layer_ref(xs_bf.astype(jnp.float32), ca_w1, ca_w2)
    assert jnp.allclose(ca_out_bf.astype(jnp.float32), ca_exp_bf,
                        atol=5e-2, rtol=5e-2), "bf16 CALayer mismatch"

    # 4) Full DownBlock forward (fused Pallas CA + residual inside each CAB).
    x = jax.random.normal(kx, (N, Cin, H, W), dtype=jnp.float32)
    down, enc = down_block_forward(x, params)
    down = jax.block_until_ready(down)
    enc = jax.block_until_ready(enc)
    down_exp, enc_exp = down_block_ref(x, params)

    assert enc.shape == (N, Cin, H, W)
    assert down.shape == (N, Cout, H // 2, W // 2)
    assert jnp.allclose(enc, enc_exp, atol=1e-4, rtol=1e-4), "encoder mismatch"
    assert jnp.allclose(down, down_exp, atol=1e-4, rtol=1e-4), "down-conv mismatch"

    print("KERNEL_OK")
</pallas_src>

<mosaic_0001>
module attributes {stable_mosaic.version = 11 : i64} {
  func.func @kernel(%arg0: i32, %arg1: memref<1x32x400xf32, #tpu.memory_space<vmem>>, %arg2: memref<2x32xf32, #tpu.memory_space<vmem>>, %arg3: memref<32x2xf32, #tpu.memory_space<vmem>>, %arg4: memref<2x1xf32, #tpu.memory_space<vmem>>, %arg5: memref<32x1xf32, #tpu.memory_space<vmem>>, %arg6: memref<1x32x400xf32, #tpu.memory_space<vmem>>) attributes {dimension_semantics = [#tpu.dimension_semantics<parallel>], iteration_bounds = array<i64: 2>, scalar_prefetch = 0 : i64, scratch_operands = 0 : i64, tpu.core_type = #tpu.core_type<tc>, window_params = [{transform_indices = @transform_0, window_bounds = array<i64: 1, 32, 400>}, {pipeline_mode = #tpu.pipeline_mode<synchronous>, transform_indices = @transform_1, window_bounds = array<i64: 2, 32>}, {pipeline_mode = #tpu.pipeline_mode<synchronous>, transform_indices = @transform_2, window_bounds = array<i64: 32, 2>}, {pipeline_mode = #tpu.pipeline_mode<synchronous>, transform_indices = @transform_3, window_bounds = array<i64: 2, 1>}, {pipeline_mode = #tpu.pipeline_mode<synchronous>, transform_indices = @transform_4, window_bounds = array<i64: 32, 1>}, {transform_indices = @transform_5, window_bounds = array<i64: 1, 32, 400>}]} {
    %c0 = arith.constant 0 : index
    %c0_0 = arith.constant 0 : index
    %c0_1 = arith.constant 0 : index
    %0 = vector.load %arg1[%c0, %c0_0, %c0_1] : memref<1x32x400xf32, #tpu.memory_space<vmem>>, vector<1x32x400xf32>
    %1 = vector.shape_cast %0 : vector<1x32x400xf32> to vector<32x400xf32>
    %cst = arith.constant dense<0.000000e+00> : vector<32xf32>
    %2 = vector.multi_reduction <add>, %1, %cst [1] : vector<32x400xf32> to vector<32xf32>
    %3 = vector.shape_cast %2 : vector<32xf32> to vector<32x1xf32>
    %cst_2 = arith.constant 2.500000e-03 : f32
    %4 = vector.broadcast %cst_2 : f32 to vector<32x1xf32>
    %5 = arith.mulf %3, %4 : vector<32x1xf32>
    %c0_3 = arith.constant 0 : index
    %c0_4 = arith.constant 0 : index
    %6 = vector.load %arg2[%c0_3, %c0_4] : memref<2x32xf32, #tpu.memory_space<vmem>>, vector<2x32xf32>
    %cst_5 = arith.constant dense<0.000000e+00> : vector<2x1xf32>
    %7 = tpu.matmul %6, %5, %cst_5 {dimension_numbers = #tpu.dot_dimension_numbers<[1], [0], [0], [1], [0, 0, 1, 1], [], []>} : vector<2x32xf32>, vector<32x1xf32>, vector<2x1xf32> -> vector<2x1xf32>
    %c0_6 = arith.constant 0 : index
    %c0_7 = arith.constant 0 : index
    %8 = vector.load %arg4[%c0_6, %c0_7] : memref<2x1xf32, #tpu.memory_space<vmem>>, vector<2x1xf32>
    %9 = arith.addf %7, %8 : vector<2x1xf32>
    %cst_8 = arith.constant 0.000000e+00 : f32
    %10 = vector.broadcast %cst_8 : f32 to vector<2x1xf32>
    %11 = arith.maximumf %9, %10 : vector<2x1xf32>
    %c0_9 = arith.constant 0 : index
    %c0_10 = arith.constant 0 : index
    %12 = vector.load %arg3[%c0_9, %c0_10] : memref<32x2xf32, #tpu.memory_space<vmem>>, vector<32x2xf32>
    %cst_11 = arith.constant dense<0.000000e+00> : vector<32x1xf32>
    %13 = tpu.matmul %12, %11, %cst_11 {dimension_numbers = #tpu.dot_dimension_numbers<[1], [0], [0], [1], [0, 0, 1, 1], [], []>} : vector<32x2xf32>, vector<2x1xf32>, vector<32x1xf32> -> vector<32x1xf32>
    %c0_12 = arith.constant 0 : index
    %c0_13 = arith.constant 0 : index
    %14 = vector.load %arg5[%c0_12, %c0_13] : memref<32x1xf32, #tpu.memory_space<vmem>>, vector<32x1xf32>
    %15 = arith.addf %13, %14 : vector<32x1xf32>
    %16 = arith.negf %15 : vector<32x1xf32>
    %17 = math.exp %16 : vector<32x1xf32>
    %cst_14 = arith.constant 1.000000e+00 : f32
    %18 = vector.broadcast %cst_14 : f32 to vector<32x1xf32>
    %19 = arith.addf %18, %17 : vector<32x1xf32>
    %20 = arith.divf %18, %19 : vector<32x1xf32>
    %21 = vector.broadcast %20 : vector<32x1xf32> to vector<32x400xf32>
    %22 = arith.mulf %1, %21 : vector<32x400xf32>
    %c0_15 = arith.constant 0 : index
    %c0_16 = arith.constant 0 : index
    %c0_17 = arith.constant 0 : index
    %23 = vector.load %arg6[%c0_15, %c0_16, %c0_17] : memref<1x32x400xf32, #tpu.memory_space<vmem>>, vector<1x32x400xf32>
    %24 = vector.shape_cast %23 : vector<1x32x400xf32> to vector<32x400xf32>
    %25 = vector.shape_cast %22 : vector<32x400xf32> to vector<1x32x400xf32>
    tpu.vector_store %arg6[%c0_15, %c0_16, %c0_17], %25 {strides = array<i32>} : memref<1x32x400xf32, #tpu.memory_space<vmem>>, vector<1x32x400xf32>,
    return
  }
  func.func @transform_0(%arg0: i32) -> (i32, i32, i32) {
    %c0_i32 = arith.constant 0 : i32
    %c0_i32_0 = arith.constant 0 : i32
    %c0_i32_1 = arith.constant 0 : i32
    return %arg0, %c0_i32, %c0_i32_0 : i32, i32, i32
  }
  func.func @transform_1(%arg0: i32) -> (i32, i32) {
    %c0_i32 = arith.constant 0 : i32
    %c0_i32_0 = arith.constant 0 : i32
    %c0_i32_1 = arith.constant 0 : i32
    return %c0_i32, %c0_i32_0 : i32, i32
  }
  func.func @transform_2(%arg0: i32) -> (i32, i32) {
    %c0_i32 = arith.constant 0 : i32
    %c0_i32_0 = arith.constant 0 : i32
    %c0_i32_1 = arith.constant 0 : i32
    return %c0_i32, %c0_i32_0 : i32, i32
  }
  func.func @transform_3(%arg0: i32) -> (i32, i32) {
    %c0_i32 = arith.constant 0 : i32
    %c0_i32_0 = arith.constant 0 : i32
    %c0_i32_1 = arith.constant 0 : i32
    return %c0_i32, %c0_i32_0 : i32, i32
  }
  func.func @transform_4(%arg0: i32) -> (i32, i32) {
    %c0_i32 = arith.constant 0 : i32
    %c0_i32_0 = arith.constant 0 : i32
    %c0_i32_1 = arith.constant 0 : i32
    return %c0_i32, %c0_i32_0 : i32, i32
  }
  func.func @transform_5(%arg0: i32) -> (i32, i32, i32) {
    %c0_i32 = arith.constant 0 : i32
    %c0_i32_0 = arith.constant 0 : i32
    %c0_i32_1 = arith.constant 0 : i32
    return %arg0, %c0_i32, %c0_i32_0 : i32, i32, i32
  }
}

</mosaic_0001>

<llo_original>
// kernel: tpu_custom_call.1
$region0: #{tpu_custom_call.1}
  #allocation0 [shape = 'u32[]', space=smem, size = 0x4, offset = 0x4, fixed_abs, tag = 'smem constant byte address 0x4 - core index']
  #allocation1 [shape = 'u32[144,128]{1,0:T(1,128)}', space=vmem, size = 0x12000, scoped, tag = 'internal scratch']
  %s0 = inlined_call_operand.hbm [shape: f32[2,32,400], index: 0, kind: input, shape index: {}]
  %s1 = inlined_call_operand.vmem [shape: f32[2,32], index: 1, kind: input, shape index: {}]
  %s2 = inlined_call_operand.vmem [shape: f32[32,2], index: 2, kind: input, shape index: {}]
  %s3 = inlined_call_operand.vmem [shape: f32[2,1], index: 3, kind: input, shape index: {}]
  %s4 = inlined_call_operand.vmem [shape: f32[32,1], index: 4, kind: input, shape index: {}]
  %s5 = inlined_call_operand.hbm [shape: f32[2,32,400], index: 5, kind: output, shape index: {}]
  %s6 = sld [smem:[#allocation0]]
  $region57: #{tpu_custom_call.1} parent=0
    _
  %s8 = ssub.s32 1, %s6
  %s9 = scalar_select 0, %s8, %s6
  $region1: #{tpu_custom_call.1} parent=0
    #allocation2 [shape = 'u8[131072]{0}', space=vmem, size = 0x20000, scoped, tag = 'input window, operand 0']
    #allocation3 [shape = 's32[2]{0}', space=sflag, size = 0x8, scoped, tag = 'scoped memory for tpu_custom_call.1']
    #allocation4 [shape = 's32[2]{0}', space=sflag, size = 0x8, scoped, tag = 'scoped memory for tpu_custom_call.1']
    #allocation5 [shape = 'u8[131072]{0}', space=vmem, size = 0x20000, scoped, tag = 'output window, operand 0']
    %10 = vsyncpa [#allocation3], 0
    %s11 = scalar_lea.sflag [#allocation3], 1
    %12 = vsyncpa %s11, 0
    %13 = vsyncpa [#allocation4], 0
    %s14 = scalar_lea.sflag [#allocation4], 1
    %15 = vsyncpa %s14, 0
    loop: start=0, step=1, limit=4
    $region2: #{tpu_custom_call.1} parent=1 // loop_pre_header
      _
    $region3: #{tpu_custom_call.1} parent=1 // loop_header
      %s17 = sphi 0, %s21
      %p18 = scmp.ge.s32.totalorder %s17, 4
      %s27 = sphi 0, %s29
      %s30 = sphi 0, %s27
      %s31 = sphi 0, %s30
      %s47 = sphi 0, %s31
      %s51 = sphi 0, %s51
      %s53 = sphi 0, %s51
      %s54 = sphi 0, %s53
      %s68 = sphi 0, %s54
      %s72 = sphi 0, %s72
      %s74 = sphi 0, %s72
      %s75 = sphi 0, %s74
      %s89 = sphi 0, %s75
      %s93 = sphi 0, %s93
      %s95 = sphi 0, %s93
      %s96 = sphi 0, %s95
      %s110 = sphi 0, %s96
      %s114 = sphi 0, %s114
      %s116 = sphi 0, %s114
      %s117 = sphi 0, %s116
      %s131 = sphi 0, %s117
      %s137 = sphi 0, %s139
      %s140 = sphi 0, %s137
      %s141 = sphi 0, %s140
      %s157 = sphi 0, %s141
    $region4: #{tpu_custom_call.1} parent=1 // loop_header_branch
      %20 = sbr.rel (%p18) target = $region8
    $region5: #{tpu_custom_call.1} parent=1 // loop_body
      %s22 = ssub.s32 %s17, 1
      %s23 = ssub.s32 %s17, 2
      %s24 = sadd.s32 %s17, 1
      %s25 = ssub.s32 %s17, %s24
      %p26 = scmp.eq.s32.totalorder %s25, 0
      %s28 = sadd.s32 %s27, 1
      %s29 = scalar_select %p26, %s27, %s28
      %p32 = pneg %p26
      %p33 = scmp.eq.s32.totalorder %s17, 1
      %p34 = por %p32, %p33
      %p35 = scmp.ne.s32.totalorder %s27, %s30
      %p36 = scmp.eq.s32.totalorder %s17, 0
      %p37 = por %p35, %p36
      %p38 = scmp.ne.s32.totalorder %s27, %s30
      %p39 = scmp.eq.s32.totalorder %s22, 1
      %p40 = por %p38, %p39
      %p41 = scmp.ne.s32.totalorder %s30, %s31
      %p42 = scmp.eq.s32.totalorder %s22, 0
      %p43 = por %p41, %p42
      %p44 = scmp.ne.s32.totalorder %s30, %s31
      %p45 = scmp.eq.s32.totalorder %s23, 1
      %p46 = por %p44, %p45
      %p48 = scmp.ne.s32.totalorder %s31, %s47
      %p49 = scmp.eq.s32.totalorder %s23, 0
      %p50 = por %p48, %p49
      %s52 = sadd.s32 %s51, 1
      %p55 = scmp.eq.s32.totalorder %s17, 1
      %p56 = scmp.ne.s32.totalorder %s51, %s53
      %p57 = scmp.eq.s32.totalorder %s17, 0
      %p58 = por %p56, %p57
      %p59 = scmp.ne.s32.totalorder %s51, %s53
      %p60 = scmp.eq.s32.totalorder %s22, 1
      %p61 = por %p59, %p60
      %p62 = scmp.ne.s32.totalorder %s53, %s54
      %p63 = scmp.eq.s32.totalorder %s22, 0
      %p64 = por %p62, %p63
      %p65 = scmp.ne.s32.totalorder %s53, %s54
      %p66 = scmp.eq.s32.totalorder %s23, 1
      %p67 = por %p65, %p66
      %p69 = scmp.ne.s32.totalorder %s54, %s68
      %p70 = scmp.eq.s32.totalorder %s23, 0
      %p71 = por %p69, %p70
      %s73 = sadd.s32 %s72, 1
      %p76 = scmp.eq.s32.totalorder %s17, 1
      %p77 = scmp.ne.s32.totalorder %s72, %s74
      %p78 = scmp.eq.s32.totalorder %s17, 0
      %p79 = por %p77, %p78
      %p80 = scmp.ne.s32.totalorder %s72, %s74
      %p81 = scmp.eq.s32.totalorder %s22, 1
      %p82 = por %p80, %p81
      %p83 = scmp.ne.s32.totalorder %s74, %s75
      %p84 = scmp.eq.s32.totalorder %s22, 0
      %p85 = por %p83, %p84
      %p86 = scmp.ne.s32.totalorder %s74, %s75
      %p87 = scmp.eq.s32.totalorder %s23, 1
      %p88 = por %p86, %p87
      %p90 = scmp.ne.s32.totalorder %s75, %s89
      %p91 = scmp.eq.s32.totalorder %s23, 0
      %p92 = por %p90, %p91
      %s94 = sadd.s32 %s93, 1
      %p97 = scmp.eq.s32.totalorder %s17, 1
      %p98 = scmp.ne.s32.totalorder %s93, %s95
      %p99 = scmp.eq.s32.totalorder %s17, 0
      %p100 = por %p98, %p99
      %p101 = scmp.ne.s32.totalorder %s93, %s95
      %p102 = scmp.eq.s32.totalorder %s22, 1
      %p103 = por %p101, %p102
      %p104 = scmp.ne.s32.totalorder %s95, %s96
      %p105 = scmp.eq.s32.totalorder %s22, 0
      %p106 = por %p104, %p105
      %p107 = scmp.ne.s32.totalorder %s95, %s96
      %p108 = scmp.eq.s32.totalorder %s23, 1
      %p109 = por %p107, %p108
      %p111 = scmp.ne.s32.totalorder %s96, %s110
      %p112 = scmp.eq.s32.totalorder %s23, 0
      %p113 = por %p111, %p112
      %s115 = sadd.s32 %s114, 1
      %p118 = scmp.eq.s32.totalorder %s17, 1
      %p119 = scmp.ne.s32.totalorder %s114, %s116
      %p120 = scmp.eq.s32.totalorder %s17, 0
      %p121 = por %p119, %p120
      %p122 = scmp.ne.s32.totalorder %s114, %s116
      %p123 = scmp.eq.s32.totalorder %s22, 1
      %p124 = por %p122, %p123
      %p125 = scmp.ne.s32.totalorder %s116, %s117
      %p126 = scmp.eq.s32.totalorder %s22, 0
      %p127 = por %p125, %p126
      %p128 = scmp.ne.s32.totalorder %s116, %s117
      %p129 = scmp.eq.s32.totalorder %s23, 1
      %p130 = por %p128, %p129
      %p132 = scmp.ne.s32.totalorder %s117, %s131
      %p133 = scmp.eq.s32.totalorder %s23, 0
      %p134 = por %p132, %p133
      %s135 = ssub.s32 %s17, %s24
      %p136 = scmp.eq.s32.totalorder %s135, 0
      %s138 = sadd.s32 %s137, 1
      %s139 = scalar_select %p136, %s137, %s138
      %p142 = pneg %p136
      %p143 = scmp.eq.s32.totalorder %s17, 1
      %p144 = por %p142, %p143
      %p145 = scmp.ne.s32.totalorder %s137, %s140
      %p146 = scmp.eq.s32.totalorder %s17, 0
      %p147 = por %p145, %p146
      %p148 = scmp.ne.s32.totalorder %s137, %s140
      %p149 = scmp.eq.s32.totalorder %s22, 1
      %p150 = por %p148, %p149
      %p151 = scmp.ne.s32.totalorder %s140, %s141
      %p152 = scmp.eq.s32.totalorder %s22, 0
      %p153 = por %p151, %p152
      %p154 = scmp.ne.s32.totalorder %s140, %s141
      %p155 = scmp.eq.s32.totalorder %s23, 1
      %p156 = por %p154, %p155
      %p158 = scmp.ne.s32.totalorder %s141, %s157
      %p159 = scmp.eq.s32.totalorder %s23, 0
      %p160 = por %p158, %p159
      %p161 = scmp.le.s32.totalorder 1, %s17
      %p162 = scmp.lt.s32.totalorder %s17, 3
      %p163 = pnand %p161, %p162
      %p164 = pneg %p163
      // Predicated region
      $region9: #{tpu_custom_call.1} parent=5 // pred_check
        _
      $region10: #{tpu_custom_call.1} parent=5 // pred_check_branch
        %166 = sbr.rel (%p163) target = $region12
      $region11: #{tpu_custom_call.1} parent=5 // pred_region
        %s167 = ssub.s32 %s17, 1
        // Predicated region
        $region13: #{tpu_custom_call.1} parent=11 // pred_check
          %p168 = pneg %p64
        $region14: #{tpu_custom_call.1} parent=11 // pred_check_branch
          %170 = sbr.rel (%p168) target = $region16
        $region15: #{tpu_custom_call.1} parent=11 // pred_region
          _
        $region16: #{tpu_custom_call.1} parent=11 // pred_fallthru
          _
        // Predicated region
        $region17: #{tpu_custom_call.1} parent=11 // pred_check
          %p171 = pneg %p85
        $region18: #{tpu_custom_call.1} parent=11 // pred_check_branch
          %173 = sbr.rel (%p171) target = $region20
        $region19: #{tpu_custom_call.1} parent=11 // pred_region
          _
        $region20: #{tpu_custom_call.1} parent=11 // pred_fallthru
          _
        // Predicated region
        $region21: #{tpu_custom_call.1} parent=11 // pred_check
          %p174 = pneg %p106
        $region22: #{tpu_custom_call.1} parent=11 // pred_check_branch
          %176 = sbr.rel (%p174) target = $region24
        $region23: #{tpu_custom_call.1} parent=11 // pred_region
          _
        $region24: #{tpu_custom_call.1} parent=11 // pred_fallthru
          _
        // Predicated region
        $region25: #{tpu_custom_call.1} parent=11 // pred_check
          %p177 = pneg %p127
        $region26: #{tpu_custom_call.1} parent=11 // pred_check_branch
          %179 = sbr.rel (%p177) target = $region28
        $region27: #{tpu_custom_call.1} parent=11 // pred_region
          _
        $region28: #{tpu_custom_call.1} parent=11 // pred_fallthru
          _
      $region12: #{tpu_custom_call.1} parent=5 // pred_fallthru
        _
      %p180 = scmp.lt.s32.totalorder %s17, 2
      // Predicated region
      $region29: #{tpu_custom_call.1} parent=5 // pred_check
        %p181 = pneg %p180
      $region30: #{tpu_custom_call.1} parent=5 // pred_check_branch
        %183 = sbr.rel (%p181) target = $region32
      $region31: #{tpu_custom_call.1} parent=5 // pred_region
        // Predicated region
        $region33: #{tpu_custom_call.1} parent=31 // pred_check
          %p184 = pneg %p37
        $region34: #{tpu_custom_call.1} parent=31 // pred_check_branch
          %186 = sbr.rel (%p184) target = $region36
        $region35: #{tpu_custom_call.1} parent=31 // pred_region
          %s187 = sand.u32 %s27, 1
          %s188 = scalar_lea.sflag [#allocation3], %s187
          %s189 = sand.u32 %s27, 1
          %s190 = smul.addr %s189, 128
          %s191 = scalar_lea.vmem [#allocation2], %s190
          %s193 = ssub.s32 2048, 2048
          %194 = vsyncadd %s188, %s193
          %s195 = smul.addr %s17, 16
          %s196 = smul.addr %s195, 128
          %s197 = scalar_lea.hbm %s0, %s196
          %s198 = sshll.u32 %s191, 4
          %s199 = int_to_ptr.vmem [resolvable:$true] %s198
          %204 = dma.hbm_to_vmem [thread:$0]  %s197, 2048, %s199, %s188, 512, 512, 32
        $region36: #{tpu_custom_call.1} parent=31 // pred_fallthru
          _
      $region32: #{tpu_custom_call.1} parent=5 // pred_fallthru
        _
      %p205 = scmp.le.s32.totalorder 1, %s17
      %p206 = scmp.lt.s32.totalorder %s17, 3
      %p207 = pnand %p205, %p206
      %p208 = pneg %p207
      // Predicated region
      $region37: #{tpu_custom_call.1} parent=5 // pred_check
        _
      $region38: #{tpu_custom_call.1} parent=5 // pred_check_branch
        %210 = sbr.rel (%p207) target = $region40
      $region39: #{tpu_custom_call.1} parent=5 // pred_region
        %s211 = ssub.s32 %s17, 1
        %s212 = sand.u32 %s30, 1
        %s213 = scalar_lea.sflag [#allocation3], %s212
        %s214 = sand.u32 %s30, 1
        %s215 = smul.addr %s214, 128
        %s216 = scalar_lea.vmem [#allocation2], %s215
        // Predicated region
        $region41: #{tpu_custom_call.1} parent=39 // pred_check
          %p217 = pneg %p43
        $region42: #{tpu_custom_call.1} parent=39 // pred_check_branch
          %219 = sbr.rel (%p217) target = $region44
        $region43: #{tpu_custom_call.1} parent=39 // pred_region
          %220 = dma.done %s213, 2048
        $region44: #{tpu_custom_call.1} parent=39 // pred_fallthru
          _
        %s221 = sand.u32 %s30, 1
        %s222 = scalar_lea.sflag [#allocation3], %s221
        %s223 = sand.u32 %s30, 1
        %s224 = smul.addr %s223, 128
        %s225 = scalar_lea.vmem [#allocation2], %s224
        %p226 = pneg %p43
        %p227 = pneg %p40
        %p228 = pneg %p64
        %p229 = pneg %p61
        %p230 = pneg %p85
        %p231 = pneg %p82
        %p232 = pneg %p106
        %p233 = pneg %p103
        %p234 = pneg %p127
        %p235 = pneg %p124
        %p236 = pneg %p153
        %p237 = pneg %p150
        %s238 = sand.u32 %s140, 1
        %s239 = scalar_lea.sflag [#allocation4], %s238
        %s240 = sand.u32 %s140, 1
        %s241 = smul.addr %s240, 128
        %s242 = scalar_lea.vmem [#allocation5], %s241
        %v243 = vld [vmem:[%s216] sm:$0xff]
        %v244 = vld [vmem:[%s216 + $0x8] sm:$0xff]
        %v245 = vld [vmem:[%s216 + $0x10] sm:$0xff]
        %v246 = vld [vmem:[%s216 + $0x18] sm:$0xff]
        %v247 = vld [vmem:[%s216 + $0x20] sm:$0xff]
        %v248 = vld [vmem:[%s216 + $0x28] sm:$0xff]
        %v249 = vld [vmem:[%s216 + $0x30] sm:$0xff]
        %v250 = vld [vmem:[%s216 + $0x38] sm:$0xff]
        %v251 = vld [vmem:[%s216 + $0x40] sm:$0xff]
        %v252 = vld [vmem:[%s216 + $0x48] sm:$0xff]
        %v253 = vld [vmem:[%s216 + $0x50] sm:$0xff]
        %v254 = vld [vmem:[%s216 + $0x58] sm:$0xff]
        %v255 = vld [vmem:[%s216 + $0x60] sm:$0xff]
        %v256 = vld [vmem:[%s216 + $0x68] sm:$0xff]
        %v257 = vld [vmem:[%s216 + $0x70] sm:$0xff]
        %v258 = vld [vmem:[%s216 + $0x78] sm:$0xff]
        %v259 = vadd.f32 %v243, %v244
        %v260 = vadd.f32 %v259, %v245
        %vm261 = vcmask 130048
        %v262 = vsel %vm261, %v246, 0.0
        %v263 = vadd.f32 %v260, %v262
        %264 = vadd.xlane.f32.xlu0 %v263
        %v265 = vpop.xlane.xlu0 %264
        %v266 = vadd.f32 %v247, %v248
        %v267 = vadd.f32 %v266, %v249
        %v268 = vsel %vm261, %v250, 0.0
        %v269 = vadd.f32 %v267, %v268
        %270 = vadd.xlane.f32.xlu0 %v269
        %v271 = vpop.xlane.xlu0 %270
        %v272 = vadd.f32 %v251, %v252
        %v273 = vadd.f32 %v272, %v253
        %v274 = vsel %vm261, %v254, 0.0
        %v275 = vadd.f32 %v273, %v274
        %276 = vadd.xlane.f32.xlu0 %v275
        %v277 = vpop.xlane.xlu0 %276
        %v278 = vadd.f32 %v255, %v256
        %v279 = vadd.f32 %v278, %v257
        %v280 = vsel %vm261, %v258, 0.0
        %v281 = vadd.f32 %v279, %v280
        %282 = vadd.xlane.f32.xlu0 %v281
        %v283 = vpop.xlane.xlu0 %282
        %v284 = vmul.f32 %v265, 0.0025
        %v285 = vmul.f32 %v271, 0.0025
        %v286 = vmul.f32 %v277, 0.0025
        %v287 = vmul.f32 %v283, 0.0025
        %v288 = vld [vmem:[%s1] sm:$0x3]
        %v289 = vld [vmem:[%s3] sm:$0x3]
        %vm290 = vcmask 261120
        %v292 = vsel %vm290, %v288, 0
        %294 = vmatprep.subr.mxu0 0.0
        %295 = vmatpush1.msra.mxu0 %v284
        %296 = vmatprep.subr.mxu0 0.0
        %297 = vmatpush1.msra.mxu0 %v285
        %298 = vmatprep.subr.mxu0 0.0
        %299 = vmatpush1.msra.mxu0 %v286
        %300 = vmatprep.subr.mxu0 0.0
        %301 = vmatpush1.msra.mxu0 %v287
        %302 = vmatprep.subr.mxu0 0.0
        %303 = vmatpush1.msra.mxu0 0.0
        %304 = vmatprep.subr.mxu0 0.0
        %305 = vmatpush1.msra.mxu0 0.0
        %306 = vmatprep.subr.mxu0 0.0
        %307 = vmatpush1.msra.mxu0 0.0
        %308 = vmatprep.subr.mxu0 0.0
        %309 = vmatpush1.msra.mxu0 0.0
        %310 = vmatprep.subr.mxu0 0.0
        %311 = vmatpush1.msra.mxu0 0.0
        %312 = vmatprep.subr.mxu0 0.0
        %313 = vmatpush1.msra.mxu0 0.0
        %314 = vmatprep.subr.mxu0 0.0
        %315 = vmatpush1.msra.mxu0 0.0
        %316 = vmatprep.subr.mxu0 0.0
        %317 = vmatpush1.msra.mxu0 0.0
        %318 = vmatprep.subr.mxu0 0.0
        %319 = vmatpush1.msra.mxu0 0.0
        %320 = vmatprep.subr.mxu0 0.0
        %321 = vmatpush1.msra.mxu0 0.0
        %322 = vmatprep.subr.mxu0 0.0
        %323 = vmatpush1.msra.mxu0 0.0
        %324 = vmatprep.subr.mxu0 0.0
        %325 = vmatpush1.msra.mxu0 0.0
        %326 = vmatprep.subr.mxu0 0.0
        %327 = vmatpush1.msra.mxu0 0.0
        %328 = vmatprep.subr.mxu0 0.0
        %329 = vmatpush1.msra.mxu0 0.0
        %330 = vmatprep.subr.mxu0 0.0
        %331 = vmatpush1.msra.mxu0 0.0
        %332 = vmatprep.subr.mxu0 0.0
        %333 = vmatpush1.msra.mxu0 0.0
        %334 = vmatprep.subr.mxu0 0.0
        %335 = vmatpush1.msra.mxu0 0.0
        %336 = vmatprep.subr.mxu0 0.0
        %337 = vmatpush1.msra.mxu0 0.0
        %338 = vmatprep.subr.mxu0 0.0
        %339 = vmatpush1.msra.mxu0 0.0
        %340 = vmatprep.subr.mxu0 0.0
        %341 = vmatpush1.msra.mxu0 0.0
        %342 = vmatprep.subr.mxu0 0.0
        %343 = vmatpush1.msra.mxu0 0.0
        %344 = vmatprep.subr.mxu0 0.0
        %345 = vmatpush1.msra.mxu0 0.0
        %346 = vmatprep.subr.mxu0 0.0
        %347 = vmatpush1.msra.mxu0 0.0
        %348 = vmatprep.subr.mxu0 0.0
        %349 = vmatpush1.msra.mxu0 0.0
        %350 = vmatprep.subr.mxu0 0.0
        %351 = vmatpush1.msra.mxu0 0.0
        %352 = vmatprep.subr.mxu0 0.0
        %353 = vmatpush1.msra.mxu0 0.0
        %354 = vmatprep.subr.mxu0 0.0
        %355 = vmatpush1.msra.mxu0 0.0
        %356 = vmatprep.subr.mxu0 0.0
        %357 = vmatpush1.msra.mxu0 0.0
        %358 = vmatprep.mubr.f32.mxu0 0.0
        %359 = vmatmul.mubr.f32.gmra.mrb[0].mxu0 %v292
        %v360 = vpop.f32.mrb[0].mxu0
        %v361 = vadd.f32 %v289, %v360
        %v362 = vpop.f32.mrb[0].mxu0
        %363 = vdwg.mxu0
        %v364 = vmax.f32 %v361, 0.0
        %v365 = vld [vmem:[%s2] sm:$0xff]
        %v366 = vld [vmem:[%s2 + $0x8] sm:$0xff]
        %v367 = vld [vmem:[%s2 + $0x10] sm:$0xff]
        %v368 = vld [vmem:[%s2 + $0x18] sm:$0xff]
        %v369 = vld [vmem:[%s4] sm:$0xff]
        %v370 = vld [vmem:[%s4 + $0x8] sm:$0xff]
        %v371 = vld [vmem:[%s4 + $0x10] sm:$0xff]
        %v372 = vld [vmem:[%s4 + $0x18] sm:$0xff]
        %vm373 = vcmask 15360
        %v375 = vsel %vm373, %v365, 0
        %v378 = vsel %vm373, %v366, 0
        %v381 = vsel %vm373, %v367, 0
        %v384 = vsel %vm373, %v368, 0
        %vm386 = vcmask 1041408
        %v388 = vsel %vm386, %v364, 0
        %390 = vmatprep.subr.mxu0 0.0
        %391 = vmatpush1.msra.mxu0 %v388
        %392 = vmatprep.subr.mxu0 0.0
        %393 = vmatpush1.msra.mxu0 0.0
        %394 = vmatprep.subr.mxu0 0.0
        %395 = vmatpush1.msra.mxu0 0.0
        %396 = vmatprep.subr.mxu0 0.0
        %397 = vmatpush1.msra.mxu0 0.0
        %398 = vmatprep.subr.mxu0 0.0
        %399 = vmatpush1.msra.mxu0 0.0
        %400 = vmatprep.subr.mxu0 0.0
        %401 = vmatpush1.msra.mxu0 0.0
        %402 = vmatprep.subr.mxu0 0.0
        %403 = vmatpush1.msra.mxu0 0.0
        %404 = vmatprep.subr.mxu0 0.0
        %405 = vmatpush1.msra.mxu0 0.0
        %406 = vmatprep.subr.mxu0 0.0
        %407 = vmatpush1.msra.mxu0 0.0
        %408 = vmatprep.subr.mxu0 0.0
        %409 = vmatpush1.msra.mxu0 0.0
        %410 = vmatprep.subr.mxu0 0.0
        %411 = vmatpush1.msra.mxu0 0.0
        %412 = vmatprep.subr.mxu0 0.0
        %413 = vmatpush1.msra.mxu0 0.0
        %414 = vmatprep.subr.mxu0 0.0
        %415 = vmatpush1.msra.mxu0 0.0
        %416 = vmatprep.subr.mxu0 0.0
        %417 = vmatpush1.msra.mxu0 0.0
        %418 = vmatprep.subr.mxu0 0.0
        %419 = vmatpush1.msra.mxu0 0.0
        %420 = vmatprep.subr.mxu0 0.0
        %421 = vmatpush1.msra.mxu0 0.0
        %422 = vmatprep.subr.mxu0 0.0
        %423 = vmatpush1.msra.mxu0 0.0
        %424 = vmatprep.subr.mxu0 0.0
        %425 = vmatpush1.msra.mxu0 0.0
        %426 = vmatprep.subr.mxu0 0.0
        %427 = vmatpush1.msra.mxu0 0.0
        %428 = vmatprep.subr.mxu0 0.0
        %429 = vmatpush1.msra.mxu0 0.0
        %430 = vmatprep.subr.mxu0 0.0
        %431 = vmatpush1.msra.mxu0 0.0
        %432 = vmatprep.subr.mxu0 0.0
        %433 = vmatpush1.msra.mxu0 0.0
        %434 = vmatprep.subr.mxu0 0.0
        %435 = vmatpush1.msra.mxu0 0.0
        %436 = vmatprep.subr.mxu0 0.0
        %437 = vmatpush1.msra.mxu0 0.0
        %438 = vmatprep.subr.mxu0 0.0
        %439 = vmatpush1.msra.mxu0 0.0
        %440 = vmatprep.subr.mxu0 0.0
        %441 = vmatpush1.msra.mxu0 0.0
        %442 = vmatprep.subr.mxu0 0.0
        %443 = vmatpush1.msra.mxu0 0.0
        %444 = vmatprep.subr.mxu0 0.0
        %445 = vmatpush1.msra.mxu0 0.0
        %446 = vmatprep.subr.mxu0 0.0
        %447 = vmatpush1.msra.mxu0 0.0
        %448 = vmatprep.subr.mxu0 0.0
        %449 = vmatpush1.msra.mxu0 0.0
        %450 = vmatprep.subr.mxu0 0.0
        %451 = vmatpush1.msra.mxu0 0.0
        %452 = vmatprep.subr.mxu0 0.0
        %453 = vmatpush1.msra.mxu0 0.0
        %454 = vmatprep.mubr.f32.mxu0 0.0
        %455 = vmatmul.mubr.f32.gmra.mrb[0].mxu0 %v375
        %v456 = vpop.f32.mrb[0].mxu0
        %v457 = vadd.f32 %v369, %v456
        %v458 = vpop.f32.mrb[0].mxu0
        %459 = vmatprep.mubr.f32.mxu0 0.0
        %460 = vmatmul.mubr.f32.gmra.mrb[0].mxu0 %v378
        %v461 = vpop.f32.mrb[0].mxu0
        %v462 = vadd.f32 %v370, %v461
        %v463 = vpop.f32.mrb[0].mxu0
        %464 = vmatprep.mubr.f32.mxu0 0.0
        %465 = vmatmul.mubr.f32.gmra.mrb[0].mxu0 %v381
        %v466 = vpop.f32.mrb[0].mxu0
        %v467 = vadd.f32 %v371, %v466
        %v468 = vpop.f32.mrb[0].mxu0
        %469 = vmatprep.mubr.f32.mxu0 0.0
        %470 = vmatmul.mubr.f32.gmra.mrb[0].mxu0 %v384
        %v471 = vpop.f32.mrb[0].mxu0
        %v472 = vadd.f32 %v372, %v471
        %v473 = vpop.f32.mrb[0].mxu0
        %474 = vdwg.mxu0
        %v475 = vxor.u32 %v457, 2147483648
        %v476 = vxor.u32 %v462, 2147483648
        %v477 = vxor.u32 %v467, 2147483648
        %v478 = vxor.u32 %v472, 2147483648
        %v479 = vmul.f32 %v475, 1.442695
        %v480 = vpow.pop %v479
        %v481 = vmul.f32 %v476, 1.442695
        %v482 = vpow.pop %v481
        %v483 = vmul.f32 %v477, 1.442695
        %v484 = vpow.pop %v483
        %v485 = vmul.f32 %v478, 1.442695
        %v486 = vpow.pop %v485
        %v487 = vadd.f32 %v480, 1.0
        %v488 = vadd.f32 %v482, 1.0
        %v489 = vadd.f32 %v484, 1.0
        %v490 = vadd.f32 %v486, 1.0
        %v491 = vrcp.pop %v487
        %v492 = vmul.f32 1.0, %v491
        %v493 = vrcp.pop %v488
        %v494 = vmul.f32 1.0, %v493
        %v495 = vrcp.pop %v489
        %v496 = vmul.f32 1.0, %v495
        %v497 = vrcp.pop %v490
        %v498 = vmul.f32 1.0, %v497
        %500 = vset.pattern.permute.xlu0 0
        %501 = vperm.xlu0 %500, %v492
        %v502 = vpop.permute.xlu0 %501
        %505 = vset.pattern.permute.xlu0 0
        %506 = vperm.xlu0 %505, %v494
        %v507 = vpop.permute.xlu0 %506
        %510 = vset.pattern.permute.xlu0 0
        %511 = vperm.xlu0 %510, %v496
        %v512 = vpop.permute.xlu0 %511
        %515 = vset.pattern.permute.xlu0 0
        %516 = vperm.xlu0 %515, %v498
        %v517 = vpop.permute.xlu0 %516
        %v519 = vmul.f32 %v243, %v502
        %v520 = vmul.f32 %v244, %v502
        %v521 = vmul.f32 %v245, %v502
        %v522 = vmul.f32 %v246, %v502
        %v523 = vmul.f32 %v247, %v507
        %v524 = vmul.f32 %v248, %v507
        %v525 = vmul.f32 %v249, %v507
        %v526 = vmul.f32 %v250, %v507
        %v527 = vmul.f32 %v251, %v512
        %v528 = vmul.f32 %v252, %v512
        %v529 = vmul.f32 %v253, %v512
        %v530 = vmul.f32 %v254, %v512
        %v531 = vmul.f32 %v255, %v517
        %v532 = vmul.f32 %v256, %v517
        %v533 = vmul.f32 %v257, %v517
        %v534 = vmul.f32 %v258, %v517
        %535 = vst [vmem:[%s242] sm:$0xff] %v519
        %536 = vst [vmem:[%s242 + $0x8] sm:$0xff] %v520
        %537 = vst [vmem:[%s242 + $0x10] sm:$0xff] %v521
        %538 = vst.msk [vmem:[%s242 + $0x18] sm:$0xff] %vm261, %v522
        %539 = vst [vmem:[%s242 + $0x20] sm:$0xff] %v523
        %540 = vst [vmem:[%s242 + $0x28] sm:$0xff] %v524
        %541 = vst [vmem:[%s242 + $0x30] sm:$0xff] %v525
        %542 = vst.msk [vmem:[%s242 + $0x38] sm:$0xff] %vm261, %v526
        %543 = vst [vmem:[%s242 + $0x40] sm:$0xff] %v527
        %544 = vst [vmem:[%s242 + $0x48] sm:$0xff] %v528
        %545 = vst [vmem:[%s242 + $0x50] sm:$0xff] %v529
        %546 = vst.msk [vmem:[%s242 + $0x58] sm:$0xff] %vm261, %v530
        %547 = vst [vmem:[%s242 + $0x60] sm:$0xff] %v531
        %548 = vst [vmem:[%s242 + $0x68] sm:$0xff] %v532
        %549 = vst [vmem:[%s242 + $0x70] sm:$0xff] %v533
        %550 = vst.msk [vmem:[%s242 + $0x78] sm:$0xff] %vm261, %v534
        %s551 = sand.u32 %s140, 1
        %s552 = scalar_lea.sflag [#allocation4], %s551
        %s553 = sand.u32 %s140, 1
        %s554 = smul.addr %s553, 128
        %s555 = scalar_lea.vmem [#allocation5], %s554
        // Predicated region
        $region45: #{tpu_custom_call.1} parent=39 // pred_check
          %p556 = pneg %p150
        $region46: #{tpu_custom_call.1} parent=39 // pred_check_branch
          %558 = sbr.rel (%p556) target = $region48
        $region47: #{tpu_custom_call.1} parent=39 // pred_region
          %s560 = ssub.s32 2048, 2048
          %561 = vsyncadd %s552, %s560
          %s562 = smul.addr %s22, 16
          %s563 = smul.addr %s562, 128
          %s564 = scalar_lea.hbm %s5, %s563
          %s565 = sshll.u32 %s555, 4
          %s566 = int_to_ptr.vmem [resolvable:$true] %s565
          %571 = dma.vmem_to_hbm [thread:$0]  %s566, 2048, %s564, %s552, 512, 512, 32
        $region48: #{tpu_custom_call.1} parent=39 // pred_fallthru
          _
      $region40: #{tpu_custom_call.1} parent=5 // pred_fallthru
        _
      %p572 = scmp.le.s32.totalorder 2, %s17
      // Predicated region
      $region49: #{tpu_custom_call.1} parent=5 // pred_check
        %p573 = pneg %p572
      $region50: #{tpu_custom_call.1} parent=5 // pred_check_branch
        %575 = sbr.rel (%p573) target = $region52
      $region51: #{tpu_custom_call.1} parent=5 // pred_region
        %s576 = ssub.s32 %s17, 2
        // Predicated region
        $region53: #{tpu_custom_call.1} parent=51 // pred_check
          %p577 = pneg %p156
        $region54: #{tpu_custom_call.1} parent=51 // pred_check_branch
          %579 = sbr.rel (%p577) target = $region56
        $region55: #{tpu_custom_call.1} parent=51 // pred_region
          %s580 = sand.u32 %s141, 1
          %s581 = scalar_lea.sflag [#allocation4], %s580
          %s582 = sand.u32 %s141, 1
          %s583 = smul.addr %s582, 128
          %s584 = scalar_lea.vmem [#allocation5], %s583
          %585 = dma.done %s581, 2048
        $region56: #{tpu_custom_call.1} parent=51 // pred_fallthru
          _
      $region52: #{tpu_custom_call.1} parent=5 // pred_fallthru
        _
    $region6: #{tpu_custom_call.1} parent=1 // loop_footer
      %s21 = sadd.s32 1, %s17
    $region7: #{tpu_custom_call.1} parent=1 // loop_footer_branch
      %16 = sbr.rel target = $region3
    $region8: #{tpu_custom_call.1} parent=1 // loop_exit
      _
    %586 = vsyncpa [#allocation3], 1
    %s587 = scalar_lea.sflag [#allocation3], 1
    %588 = vsyncpa %s587, 1
    %589 = vsyncpa [#allocation4], 1
    %s590 = scalar_lea.sflag [#allocation4], 1
    %591 = vsyncpa %s590, 1

</llo_original>
